<compile_context>
chip_gen: v6e
topology: v6e:2x2x1
jax: 0.10.0
libtpu: 0.0.40
codegen_flags: <defaults>
</compile_context>

<pallas_src>
import jax
import jax.numpy as jnp
from jax.experimental import pallas as pl
from jax.experimental.pallas import tpu as pltpu


# Qnet layer sizes: (in_features, out_features) per nn.Linear.
_LAYER_SIZES = [(4, 32), (32, 64), (64, 128), (128, 128), (128, 8)]
_NUM_LAYERS = len(_LAYER_SIZES)
_PAD = 128  # every hidden layer's in/out is padded to 128 (one full lane tile)


def _round_up(n, m):
    return ((n + m - 1) // m) * m


def qnet_kernel(x_ref, w1_ref, w_ref, b_ref, o_ref):
    """Fused 5-layer MLP forward for one [tile, 4] batch tile.

    x_ref:  [tile, 4]    f32 input tile.
    w1_ref: [8, 128]     f32 layer-1 weights; rows 0..3 live, rest zero.
    w_ref:  [128, 4*128] weight slab (compute dtype, bf16 by default) for
                         layers 2..5; layer l (1-indexed from 2) lives in
                         columns [(l-2)*128:(l-1)*128], rows [:in_l]; rest 0.
    b_ref:  [1, 5*128]   f32 bias slab, zero-padded to 128 per layer.
    o_ref:  [tile, 8]    f32 output: the 8 Q-values per row.
    """
    x = x_ref[...]                      # [tile, 4] f32
    cdt = w_ref.dtype                   # matmul operand dtype (bf16 or f32)

    # ---- Layer 1 (K=4): a 4-deep contraction wastes an MXU pass and sits on
    # the serial critical path, so do it as 4 broadcast multiply-adds on the
    # (otherwise idle) VPU, fully in f32.
    h = (x[:, 0:1] * w1_ref[0:1, :]
         + x[:, 1:2] * w1_ref[1:2, :]
         + x[:, 2:3] * w1_ref[2:3, :]
         + x[:, 3:4] * w1_ref[3:4, :])                  # [tile, 128]
    h = jnp.maximum(h + b_ref[:, 0:_PAD], 0.0)          # cols 32..127 stay 0

    # ---- Layers 2..4: MXU matmuls (bf16 operands by default), f32 acc, ReLU.
    # TODO(synk): if a bundle dump shows MXU idle during the bias+ReLU+cast
    # epilogues, split the tile into two sub-tiles and interleave layers.
    for l in range(1, _NUM_LAYERS - 1):
        w_l = w_ref[:, (l - 1) * _PAD:l * _PAD]         # [128, 128]
        b_l = b_ref[:, l * _PAD:(l + 1) * _PAD]         # [1, 128]
        h = jnp.dot(h.astype(cdt), w_l, preferred_element_type=jnp.float32)
        h = jnp.maximum(h + b_l, 0.0)

    # ---- Layer 5: no activation; store only the 8 real Q-value lanes.
    l = _NUM_LAYERS - 1
    w_l = w_ref[:, (l - 1) * _PAD:l * _PAD]
    b_l = b_ref[:, l * _PAD:(l + 1) * _PAD]
    h = jnp.dot(h.astype(cdt), w_l, preferred_element_type=jnp.float32) + b_l
    o_ref[...] = h[:, :o_ref.shape[-1]].astype(o_ref.dtype)


def pack_params(params, compute_dtype=jnp.bfloat16):
    """Pack parameters into TPU-friendly slabs.

    Returns:
      w1_slab: [8, 128]   f32 (layer 1, kept full precision for the VPU path).
      w_slab:  [128, 512] compute_dtype (layers 2..5, MXU operands).
      b_slab:  [1, 640]   f32 (all 5 biases, 128-padded each).
    """
    fin1, fout1 = _LAYER_SIZES[0]
    w1 = jnp.asarray(params["w1"], jnp.float32)
    b1 = jnp.asarray(params["b1"], jnp.float32).reshape(1, fout1)
    w1_slab = jnp.zeros((8, _PAD), jnp.float32).at[:fin1, :fout1].set(w1)

    b_cols = [jnp.zeros((1, _PAD), jnp.float32).at[:, :fout1].set(b1)]
    w_cols = []
    for l in range(1, _NUM_LAYERS):
        fin, fout = _LAYER_SIZES[l]
        w = jnp.asarray(params[f"w{l + 1}"], jnp.float32)
        b = jnp.asarray(params[f"b{l + 1}"], jnp.float32).reshape(1, fout)
        w_cols.append(jnp.zeros((_PAD, _PAD), jnp.float32).at[:fin, :fout].set(w))
        b_cols.append(jnp.zeros((1, _PAD), jnp.float32).at[:, :fout].set(b))
    w_slab = jnp.concatenate(w_cols, axis=1).astype(compute_dtype)  # [128, 512]
    b_slab = jnp.concatenate(b_cols, axis=1)                        # [1, 640]
    return w1_slab, w_slab, b_slab


def qnet_forward(x, params, *, batch_tile=1024, compute_dtype=jnp.bfloat16,
                 min_grid_steps=4):
    """Run the fused Qnet forward pass.

    x: [B, 4] float32 observations.
    params: dict with w1..w5 ([in, out]) and b1..b5 ([1, out]).
    batch_tile: max rows per grid step (multiple of 8; per-step VMEM footprint
                is ~1 KB/row, far under every generation's scoped VMEM limit).
    compute_dtype: operand dtype for the MXU matmuls (bf16 default, f32
                   available); accumulation is always f32; layer 1 is f32.
    min_grid_steps: for large batches, cap the tile so the grid has at least
                    this many steps (lets v7x's two TensorCores both get work).
    """
    x = jnp.asarray(x, jnp.float32)
    B, fin = x.shape
    assert fin == _LAYER_SIZES[0][0]
    n_out = _LAYER_SIZES[-1][1]

    # Tile selection: multiple of 8 sublanes; don't inflate tiny batches;
    # for big batches ensure >= min_grid_steps grid steps (megacore sharding).
    b8 = _round_up(B, 8)
    tile = min(int(batch_tile), b8)
    if B >= min_grid_steps * 8:
        tile = min(tile, _round_up(pl.cdiv(b8, min_grid_steps), 8))
    tile = max(8, _round_up(tile, 8))
    Bp = _round_up(B, tile)
    if Bp != B:
        x = jnp.pad(x, ((0, Bp - B), (0, 0)))

    w1_slab, w_slab, b_slab = pack_params(params, compute_dtype)

    grid = (Bp // tile,)
    flops = 2 * Bp * sum(fi * fo for fi, fo in _LAYER_SIZES)
    bytes_accessed = (Bp * fin * 4                       # x
                      + Bp * n_out * 4                   # narrow output
                      + w1_slab.size * 4
                      + w_slab.size * jnp.dtype(w_slab.dtype).itemsize
                      + b_slab.size * 4)

    out = pl.pallas_call(
        qnet_kernel,
        out_shape=jax.ShapeDtypeStruct((Bp, n_out), jnp.float32),
        grid=grid,
        in_specs=[
            pl.BlockSpec((tile, fin), lambda i: (i, 0)),       # x batch tile
            pl.BlockSpec(w1_slab.shape, lambda i: (0, 0)),     # resident w1 (f32)
            pl.BlockSpec(w_slab.shape, lambda i: (0, 0)),      # resident w2..w5
            pl.BlockSpec(b_slab.shape, lambda i: (0, 0)),      # resident biases
        ],
        out_specs=pl.BlockSpec((tile, n_out), lambda i: (i, 0)),
        compiler_params=pltpu.CompilerParams(
            dimension_semantics=("parallel",)),
        cost_estimate=pl.CostEstimate(
            flops=flops, transcendentals=0, bytes_accessed=bytes_accessed),
    )(x, w1_slab, w_slab, b_slab)

    return out[:B, :]


def init_params(key):
    """Deterministic synthetic parameters (PyTorch-style uniform fan-in init)."""
    params = {}
    keys = jax.random.split(key, 2 * _NUM_LAYERS)
    for idx, (fan_in, fan_out) in enumerate(_LAYER_SIZES):
        bound = 1.0 / float(fan_in) ** 0.5
        w = jax.random.uniform(keys[2 * idx], (fan_in, fan_out),
                               minval=-bound, maxval=bound, dtype=jnp.float32)
        b = jax.random.uniform(keys[2 * idx + 1], (1, fan_out),
                               minval=-bound, maxval=bound, dtype=jnp.float32)
        params[f"w{idx + 1}"] = w
        params[f"b{idx + 1}"] = b
    return params


def qnet_reference(x, params):
    """Pure-JAX f32 reference for correctness checking."""
    hi = jax.lax.Precision.HIGHEST
    h = jnp.maximum(jnp.dot(x, params["w1"], precision=hi) + params["b1"], 0.0)
    h = jnp.maximum(jnp.dot(h, params["w2"], precision=hi) + params["b2"], 0.0)
    h = jnp.maximum(jnp.dot(h, params["w3"], precision=hi) + params["b3"], 0.0)
    h = jnp.maximum(jnp.dot(h, params["w4"], precision=hi) + params["b4"], 0.0)
    return jnp.dot(h, params["w5"], precision=hi) + params["b5"]


# TODO(synk): Qnet.sample_action (host-side epsilon-greedy with Python RNG) is
# control flow outside the forward pass and is intentionally not a kernel.

if __name__ == "__main__":
    key = jax.random.PRNGKey(0)
    pkey, xkey = jax.random.split(key)
    params = init_params(pkey)

    # Small batch of 4-dim observations, f32 MXU operands: tight parity.
    x_small = jax.random.normal(xkey, (8, 4), dtype=jnp.float32)
    out = jax.block_until_ready(
        qnet_forward(x_small, params, compute_dtype=jnp.float32))
    ref = qnet_reference(x_small, params)
    assert out.shape == (8, 8)
    assert jnp.allclose(out, ref, atol=1e-4, rtol=1e-4)

    # Larger, non-multiple-of-tile batch with default bf16 MXU operands:
    # exercises multi-step grid (megacore sharding), padding, narrow output.
    x_big = jax.random.normal(jax.random.PRNGKey(1), (2000, 4), dtype=jnp.float32)
    out_big = jax.block_until_ready(qnet_forward(x_big, params))
    ref_big = qnet_reference(x_big, params)
    assert out_big.shape == (2000, 8)
    assert jnp.allclose(out_big, ref_big, atol=5e-2, rtol=5e-2)

    # f32 MXU path on the large batch as well (tight tolerance).
    out_big_f32 = jax.block_until_ready(
        qnet_forward(x_big, params, compute_dtype=jnp.float32))
    assert jnp.allclose(out_big_f32, ref_big, atol=1e-4, rtol=1e-4)

    print("KERNEL_OK")
</pallas_src>

<mosaic_0001>
module attributes {stable_mosaic.version = 11 : i64} {
  func.func @qnet_kernel(%arg0: i32, %arg1: memref<8x4xf32, #tpu.memory_space<vmem>>, %arg2: memref<8x128xf32, #tpu.memory_space<vmem>>, %arg3: memref<128x512xf32, #tpu.memory_space<vmem>>, %arg4: memref<1x640xf32, #tpu.memory_space<vmem>>, %arg5: memref<8x8xf32, #tpu.memory_space<vmem>>) attributes {dimension_semantics = [#tpu.dimension_semantics<parallel>], iteration_bounds = array<i64: 1>, scalar_prefetch = 0 : i64, scratch_operands = 0 : i64, tpu.core_type = #tpu.core_type<tc>, window_params = [{transform_indices = @transform_0, window_bounds = array<i64: 8, 4>}, {pipeline_mode = #tpu.pipeline_mode<synchronous>, transform_indices = @transform_1, window_bounds = array<i64: 8, 128>}, {pipeline_mode = #tpu.pipeline_mode<synchronous>, transform_indices = @transform_2, window_bounds = array<i64: 128, 512>}, {pipeline_mode = #tpu.pipeline_mode<synchronous>, transform_indices = @transform_3, window_bounds = array<i64: 1, 640>}, {transform_indices = @transform_4, window_bounds = array<i64: 8, 8>}]} {
    %c0 = arith.constant 0 : index
    %c0_0 = arith.constant 0 : index
    %0 = vector.load %arg1[%c0, %c0_0] : memref<8x4xf32, #tpu.memory_space<vmem>>, vector<8x4xf32>
    %1 = vector.extract_strided_slice %0 {offsets = [0, 0], sizes = [8, 1], strides = [1, 1]} : vector<8x4xf32> to vector<8x1xf32>
    %c0_1 = arith.constant 0 : index
    %c0_2 = arith.constant 0 : index
    %2 = vector.load %arg2[%c0_1, %c0_2] : memref<8x128xf32, #tpu.memory_space<vmem>>, vector<1x128xf32>
    %3 = vector.broadcast %1 : vector<8x1xf32> to vector<8x128xf32>
    %4 = vector.broadcast %2 : vector<1x128xf32> to vector<8x128xf32>
    %5 = arith.mulf %3, %4 : vector<8x128xf32>
    %6 = vector.extract_strided_slice %0 {offsets = [0, 1], sizes = [8, 1], strides = [1, 1]} : vector<8x4xf32> to vector<8x1xf32>
    %c1 = arith.constant 1 : index
    %c0_3 = arith.constant 0 : index
    %7 = vector.load %arg2[%c1, %c0_3] : memref<8x128xf32, #tpu.memory_space<vmem>>, vector<1x128xf32>
    %8 = vector.broadcast %6 : vector<8x1xf32> to vector<8x128xf32>
    %9 = vector.broadcast %7 : vector<1x128xf32> to vector<8x128xf32>
    %10 = arith.mulf %8, %9 : vector<8x128xf32>
    %11 = arith.addf %5, %10 : vector<8x128xf32>
    %12 = vector.extract_strided_slice %0 {offsets = [0, 2], sizes = [8, 1], strides = [1, 1]} : vector<8x4xf32> to vector<8x1xf32>
    %c2 = arith.constant 2 : index
    %c0_4 = arith.constant 0 : index
    %13 = vector.load %arg2[%c2, %c0_4] : memref<8x128xf32, #tpu.memory_space<vmem>>, vector<1x128xf32>
    %14 = vector.broadcast %12 : vector<8x1xf32> to vector<8x128xf32>
    %15 = vector.broadcast %13 : vector<1x128xf32> to vector<8x128xf32>
    %16 = arith.mulf %14, %15 : vector<8x128xf32>
    %17 = arith.addf %11, %16 : vector<8x128xf32>
    %18 = vector.extract_strided_slice %0 {offsets = [0, 3], sizes = [8, 1], strides = [1, 1]} : vector<8x4xf32> to vector<8x1xf32>
    %c3 = arith.constant 3 : index
    %c0_5 = arith.constant 0 : index
    %19 = vector.load %arg2[%c3, %c0_5] : memref<8x128xf32, #tpu.memory_space<vmem>>, vector<1x128xf32>
    %20 = vector.broadcast %18 : vector<8x1xf32> to vector<8x128xf32>
    %21 = vector.broadcast %19 : vector<1x128xf32> to vector<8x128xf32>
    %22 = arith.mulf %20, %21 : vector<8x128xf32>
    %23 = arith.addf %17, %22 : vector<8x128xf32>
    %c0_6 = arith.constant 0 : index
    %c0_7 = arith.constant 0 : index
    %24 = vector.load %arg4[%c0_6, %c0_7] : memref<1x640xf32, #tpu.memory_space<vmem>>, vector<1x128xf32>
    %25 = vector.broadcast %24 : vector<1x128xf32> to vector<8x128xf32>
    %26 = arith.addf %23, %25 : vector<8x128xf32>
    %cst = arith.constant 0.000000e+00 : f32
    %27 = vector.broadcast %cst : f32 to vector<8x128xf32>
    %28 = arith.maximumf %26, %27 : vector<8x128xf32>
    %c0_8 = arith.constant 0 : index
    %c0_9 = arith.constant 0 : index
    %29 = vector.load %arg3[%c0_8, %c0_9] : memref<128x512xf32, #tpu.memory_space<vmem>>, vector<128x128xf32>
    %c0_10 = arith.constant 0 : index
    %c128 = arith.constant 128 : index
    %30 = vector.load %arg4[%c0_10, %c128] : memref<1x640xf32, #tpu.memory_space<vmem>>, vector<1x128xf32>
    %cst_11 = arith.constant dense<0.000000e+00> : vector<8x128xf32>
    %31 = tpu.matmul %28, %29, %cst_11 {dimension_numbers = #tpu.dot_dimension_numbers<[1], [0], [0], [1], [0, 0, 1, 1], [], []>} : vector<8x128xf32>, vector<128x128xf32>, vector<8x128xf32> -> vector<8x128xf32>
    %32 = vector.broadcast %30 : vector<1x128xf32> to vector<8x128xf32>
    %33 = arith.addf %31, %32 : vector<8x128xf32>
    %cst_12 = arith.constant 0.000000e+00 : f32
    %34 = vector.broadcast %cst_12 : f32 to vector<8x128xf32>
    %35 = arith.maximumf %33, %34 : vector<8x128xf32>
    %c0_13 = arith.constant 0 : index
    %c128_14 = arith.constant 128 : index
    %36 = vector.load %arg3[%c0_13, %c128_14] : memref<128x512xf32, #tpu.memory_space<vmem>>, vector<128x128xf32>
    %c0_15 = arith.constant 0 : index
    %c256 = arith.constant 256 : index
    %37 = vector.load %arg4[%c0_15, %c256] : memref<1x640xf32, #tpu.memory_space<vmem>>, vector<1x128xf32>
    %cst_16 = arith.constant dense<0.000000e+00> : vector<8x128xf32>
    %38 = tpu.matmul %35, %36, %cst_16 {dimension_numbers = #tpu.dot_dimension_numbers<[1], [0], [0], [1], [0, 0, 1, 1], [], []>} : vector<8x128xf32>, vector<128x128xf32>, vector<8x128xf32> -> vector<8x128xf32>
    %39 = vector.broadcast %37 : vector<1x128xf32> to vector<8x128xf32>
    %40 = arith.addf %38, %39 : vector<8x128xf32>
    %cst_17 = arith.constant 0.000000e+00 : f32
    %41 = vector.broadcast %cst_17 : f32 to vector<8x128xf32>
    %42 = arith.maximumf %40, %41 : vector<8x128xf32>
    %c0_18 = arith.constant 0 : index
    %c256_19 = arith.constant 256 : index
    %43 = vector.load %arg3[%c0_18, %c256_19] : memref<128x512xf32, #tpu.memory_space<vmem>>, vector<128x128xf32>
    %c0_20 = arith.constant 0 : index
    %c384 = arith.constant 384 : index
    %44 = vector.load %arg4[%c0_20, %c384] : memref<1x640xf32, #tpu.memory_space<vmem>>, vector<1x128xf32>
    %cst_21 = arith.constant dense<0.000000e+00> : vector<8x128xf32>
    %45 = tpu.matmul %42, %43, %cst_21 {dimension_numbers = #tpu.dot_dimension_numbers<[1], [0], [0], [1], [0, 0, 1, 1], [], []>} : vector<8x128xf32>, vector<128x128xf32>, vector<8x128xf32> -> vector<8x128xf32>
    %46 = vector.broadcast %44 : vector<1x128xf32> to vector<8x128xf32>
    %47 = arith.addf %45, %46 : vector<8x128xf32>
    %cst_22 = arith.constant 0.000000e+00 : f32
    %48 = vector.broadcast %cst_22 : f32 to vector<8x128xf32>
    %49 = arith.maximumf %47, %48 : vector<8x128xf32>
    %c0_23 = arith.constant 0 : index
    %c384_24 = arith.constant 384 : index
    %50 = vector.load %arg3[%c0_23, %c384_24] : memref<128x512xf32, #tpu.memory_space<vmem>>, vector<128x128xf32>
    %c0_25 = arith.constant 0 : index
    %c512 = arith.constant 512 : index
    %51 = vector.load %arg4[%c0_25, %c512] : memref<1x640xf32, #tpu.memory_space<vmem>>, vector<1x128xf32>
    %cst_26 = arith.constant dense<0.000000e+00> : vector<8x128xf32>
    %52 = tpu.matmul %49, %50, %cst_26 {dimension_numbers = #tpu.dot_dimension_numbers<[1], [0], [0], [1], [0, 0, 1, 1], [], []>} : vector<8x128xf32>, vector<128x128xf32>, vector<8x128xf32> -> vector<8x128xf32>
    %53 = vector.broadcast %51 : vector<1x128xf32> to vector<8x128xf32>
    %54 = arith.addf %52, %53 : vector<8x128xf32>
    %55 = vector.extract_strided_slice %54 {offsets = [0, 0], sizes = [8, 8], strides = [1, 1]} : vector<8x128xf32> to vector<8x8xf32>
    %c0_27 = arith.constant 0 : index
    %c0_28 = arith.constant 0 : index
    %56 = vector.load %arg5[%c0_27, %c0_28] : memref<8x8xf32, #tpu.memory_space<vmem>>, vector<8x8xf32>
    tpu.vector_store %arg5[%c0_27, %c0_28], %55 {strides = array<i32>} : memref<8x8xf32, #tpu.memory_space<vmem>>, vector<8x8xf32>,
    return
  }
  func.func @transform_0(%arg0: i32) -> (i32, i32) {
    %c0_i32 = arith.constant 0 : i32
    %c0_i32_0 = arith.constant 0 : i32
    return %arg0, %c0_i32 : i32, i32
  }
  func.func @transform_1(%arg0: i32) -> (i32, i32) {
    %c0_i32 = arith.constant 0 : i32
    %c0_i32_0 = arith.constant 0 : i32
    %c0_i32_1 = arith.constant 0 : i32
    return %c0_i32, %c0_i32_0 : i32, i32
  }
  func.func @transform_2(%arg0: i32) -> (i32, i32) {
    %c0_i32 = arith.constant 0 : i32
    %c0_i32_0 = arith.constant 0 : i32
    %c0_i32_1 = arith.constant 0 : i32
    return %c0_i32, %c0_i32_0 : i32, i32
  }
  func.func @transform_3(%arg0: i32) -> (i32, i32) {
    %c0_i32 = arith.constant 0 : i32
    %c0_i32_0 = arith.constant 0 : i32
    %c0_i32_1 = arith.constant 0 : i32
    return %c0_i32, %c0_i32_0 : i32, i32
  }
  func.func @transform_4(%arg0: i32) -> (i32, i32) {
    %c0_i32 = arith.constant 0 : i32
    %c0_i32_0 = arith.constant 0 : i32
    return %arg0, %c0_i32 : i32, i32
  }
}

</mosaic_0001>

<llo_original>
// kernel: tpu_custom_call.1
$region0: #{tpu_custom_call.1}
  #allocation0 [shape = 'u32[]', space=smem, size = 0x4, offset = 0x4, fixed_abs, tag = 'smem constant byte address 0x4 - core index']
  #allocation1 [shape = 'u32[144,128]{1,0:T(1,128)}', space=vmem, size = 0x12000, scoped, tag = 'internal scratch']
  %s0 = inlined_call_operand.vmem [shape: f32[8,4], index: 0, kind: input, shape index: {}]
  %s1 = inlined_call_operand.vmem [shape: f32[8,128], index: 1, kind: input, shape index: {}]
  %s2 = inlined_call_operand.hbm [shape: f32[128,512], index: 2, kind: input, shape index: {}]
  %s3 = inlined_call_operand.vmem [shape: f32[1,640], index: 3, kind: input, shape index: {}]
  %s4 = inlined_call_operand.hbm [shape: f32[8,8], index: 4, kind: output, shape index: {}]
  %s5 = sld [smem:[#allocation0]]
  $region30: #{tpu_custom_call.1} parent=0
    _
  %s7 = ssub.s32 1, %s5
  %s8 = scalar_select 0, %s7, %s5
  $region1: #{tpu_custom_call.1} parent=0
    #allocation2 [shape = 'u8[262144]{0}', space=vmem, size = 0x40000, scoped, tag = 'input window, operand 2, single buffered']
    #allocation3 [shape = 's32[1]{0}', space=sflag, size = 0x4, scoped, tag = 'scoped memory for tpu_custom_call.1']
    #allocation4 [shape = 's32[1]{0}', space=sflag, size = 0x4, scoped, tag = 'scoped memory for tpu_custom_call.1']
    #allocation5 [shape = 'u8[4096]{0}', space=vmem, size = 0x1000, scoped, tag = 'output window, operand 0, single buffered']
    %9 = vsyncpa [#allocation3], 0
    %10 = vsyncpa [#allocation4], 0
    // Predicated region
    $region2: #{tpu_custom_call.1} parent=1 // pred_check
      _
    $region3: #{tpu_custom_call.1} parent=1 // pred_check_branch
      %12 = sbr.rel (0) target = $region5
    $region4: #{tpu_custom_call.1} parent=1 // pred_region
      _
    $region5: #{tpu_custom_call.1} parent=1 // pred_fallthru
      _
    // Predicated region
    $region6: #{tpu_custom_call.1} parent=1 // pred_check
      _
    $region7: #{tpu_custom_call.1} parent=1 // pred_check_branch
      %14 = sbr.rel (0) target = $region9
    $region8: #{tpu_custom_call.1} parent=1 // pred_region
      _
    $region9: #{tpu_custom_call.1} parent=1 // pred_fallthru
      _
    // Predicated region
    $region10: #{tpu_custom_call.1} parent=1 // pred_check
      _
    $region11: #{tpu_custom_call.1} parent=1 // pred_check_branch
      %16 = sbr.rel (0) target = $region13
    $region12: #{tpu_custom_call.1} parent=1 // pred_region
      %s18 = ssub.s32 8192, 8192
      %19 = vsyncadd [#allocation3], %s18
      %s20 = sshll.u32 [#allocation2], 4
      %s21 = int_to_ptr.vmem [resolvable:$true] %s20
      %26 = dma.hbm_to_vmem [thread:$0]  %s2, 8192, %s21, [#allocation3], 512, 512, 32
    $region13: #{tpu_custom_call.1} parent=1 // pred_fallthru
      _
    // Predicated region
    $region14: #{tpu_custom_call.1} parent=1 // pred_check
      _
    $region15: #{tpu_custom_call.1} parent=1 // pred_check_branch
      %28 = sbr.rel (0) target = $region17
    $region16: #{tpu_custom_call.1} parent=1 // pred_region
      _
    $region17: #{tpu_custom_call.1} parent=1 // pred_fallthru
      _
    // Predicated region
    $region18: #{tpu_custom_call.1} parent=1 // pred_check
      _
    $region19: #{tpu_custom_call.1} parent=1 // pred_check_branch
      %30 = sbr.rel (0) target = $region21
    $region20: #{tpu_custom_call.1} parent=1 // pred_region
      %31 = dma.done [#allocation3], 8192
    $region21: #{tpu_custom_call.1} parent=1 // pred_fallthru
      _
    %v32 = vld [vmem:[%s0] sm:$0xff]
    %v33 = vld [vmem:[%s1] sm:$0x1]
    %35 = vset.pattern.permute.xlu0 0
    %36 = vperm.xlu0 %35, %v32
    %v37 = vpop.permute.xlu0 %36
    %v39 = vlaneseq
    %v40 = vshrl.u32 %v39, 7
    %v41 = vsub.s32 0, %v40
    %v42 = vrot.slane %v33, %v41
    %v43 = vmul.f32 %v37, %v42
    %v44 = vld [vmem:[%s1 + $0x1] sm:$0x1]
    %45 = vset.pattern.permute.xlu0 1
    %46 = vperm.xlu0 %45, %v32
    %v47 = vpop.permute.xlu0 %46
    %v49 = vlaneseq
    %v50 = vshrl.u32 %v49, 7
    %v51 = vsub.s32 0, %v50
    %v52 = vrot.slane %v44, %v51
    %v53 = vmul.f32 %v47, %v52
    %v54 = vadd.f32 %v43, %v53
    %v55 = vld [vmem:[%s1 + $0x2] sm:$0x1]
    %56 = vset.pattern.permute.xlu0 2
    %57 = vperm.xlu0 %56, %v32
    %v58 = vpop.permute.xlu0 %57
    %v60 = vlaneseq
    %v61 = vshrl.u32 %v60, 7
    %v62 = vsub.s32 0, %v61
    %v63 = vrot.slane %v55, %v62
    %v64 = vmul.f32 %v58, %v63
    %v65 = vadd.f32 %v54, %v64
    %v66 = vld [vmem:[%s1 + $0x3] sm:$0x1]
    %67 = vset.pattern.permute.xlu0 3
    %68 = vperm.xlu0 %67, %v32
    %v69 = vpop.permute.xlu0 %68
    %v71 = vlaneseq
    %v72 = vshrl.u32 %v71, 7
    %v73 = vsub.s32 0, %v72
    %v74 = vrot.slane %v66, %v73
    %v75 = vmul.f32 %v69, %v74
    %v76 = vadd.f32 %v65, %v75
    %v77 = vld [vmem:[%s3] sm:$0x1]
    %v79 = vlaneseq
    %v80 = vshrl.u32 %v79, 7
    %v81 = vsub.s32 0, %v80
    %v82 = vrot.slane %v77, %v81
    %v84 = vadd.f32 %v76, %v82
    %v85 = vmax.f32 %v84, 0.0
    %v86 = vld [vmem:[#allocation2] sm:$0xff]
    %v87 = vld [vmem:[#allocation2 + $0x20] sm:$0xff]
    %v88 = vld [vmem:[#allocation2 + $0x40] sm:$0xff]
    %v89 = vld [vmem:[#allocation2 + $0x60] sm:$0xff]
    %v90 = vld [vmem:[#allocation2 + $0x80] sm:$0xff]
    %v91 = vld [vmem:[#allocation2 + $0xa0] sm:$0xff]
    %v92 = vld [vmem:[#allocation2 + $0xc0] sm:$0xff]
    %v93 = vld [vmem:[#allocation2 + $0xe0] sm:$0xff]
    %v94 = vld [vmem:[#allocation2 + $0x100] sm:$0xff]
    %v95 = vld [vmem:[#allocation2 + $0x120] sm:$0xff]
    %v96 = vld [vmem:[#allocation2 + $0x140] sm:$0xff]
    %v97 = vld [vmem:[#allocation2 + $0x160] sm:$0xff]
    %v98 = vld [vmem:[#allocation2 + $0x180] sm:$0xff]
    %v99 = vld [vmem:[#allocation2 + $0x1a0] sm:$0xff]
    %v100 = vld [vmem:[#allocation2 + $0x1c0] sm:$0xff]
    %v101 = vld [vmem:[#allocation2 + $0x1e0] sm:$0xff]
    %v102 = vld [vmem:[%s3 + $0x1] sm:$0x1]
    %v104 = vlaneseq
    %v105 = vshrl.u32 %v104, 7
    %v106 = vsub.s32 0, %v105
    %v107 = vrot.slane %v102, %v106
    %109 = vmatprep.subr.mxu0 0.0
    %110 = vmatpush1.msra.mxu0 %v101
    %111 = vmatprep.subr.mxu0 0.0
    %112 = vmatpush1.msra.mxu0 %v100
    %113 = vmatprep.subr.mxu0 0.0
    %114 = vmatpush1.msra.mxu0 %v99
    %115 = vmatprep.subr.mxu0 0.0
    %116 = vmatpush1.msra.mxu0 %v98
    %117 = vmatprep.subr.mxu0 0.0
    %118 = vmatpush1.msra.mxu0 %v97
    %119 = vmatprep.subr.mxu0 0.0
    %120 = vmatpush1.msra.mxu0 %v96
    %121 = vmatprep.subr.mxu0 0.0
    %122 = vmatpush1.msra.mxu0 %v95
    %123 = vmatprep.subr.mxu0 0.0
    %124 = vmatpush1.msra.mxu0 %v94
    %125 = vmatprep.subr.mxu0 0.0
    %126 = vmatpush1.msra.mxu0 %v93
    %127 = vmatprep.subr.mxu0 0.0
    %128 = vmatpush1.msra.mxu0 %v92
    %129 = vmatprep.subr.mxu0 0.0
    %130 = vmatpush1.msra.mxu0 %v91
    %131 = vmatprep.subr.mxu0 0.0
    %132 = vmatpush1.msra.mxu0 %v90
    %133 = vmatprep.subr.mxu0 0.0
    %134 = vmatpush1.msra.mxu0 %v89
    %135 = vmatprep.subr.mxu0 0.0
    %136 = vmatpush1.msra.mxu0 %v88
    %137 = vmatprep.subr.mxu0 0.0
    %138 = vmatpush1.msra.mxu0 %v87
    %139 = vmatprep.subr.mxu0 0.0
    %140 = vmatpush1.msra.mxu0 %v86
    %141 = vmatprep.subr.mxu0 0.0
    %142 = vmatpush2.msra.mxu0 0.0
    %143 = vmatprep.subr.mxu0 0.0
    %144 = vmatpush2.msra.mxu0 0.0
    %145 = vmatprep.subr.mxu0 0.0
    %146 = vmatpush2.msra.mxu0 0.0
    %147 = vmatprep.subr.mxu0 0.0
    %148 = vmatpush2.msra.mxu0 0.0
    %149 = vmatprep.subr.mxu0 0.0
    %150 = vmatpush2.msra.mxu0 0.0
    %151 = vmatprep.subr.mxu0 0.0
    %152 = vmatpush2.msra.mxu0 0.0
    %153 = vmatprep.subr.mxu0 0.0
    %154 = vmatpush2.msra.mxu0 0.0
    %155 = vmatprep.subr.mxu0 0.0
    %156 = vmatpush2.msra.mxu0 0.0
    %157 = vmatprep.subr.mxu0 0.0
    %158 = vmatpush2.msra.mxu0 0.0
    %159 = vmatprep.subr.mxu0 0.0
    %160 = vmatpush2.msra.mxu0 0.0
    %161 = vmatprep.subr.mxu0 0.0
    %162 = vmatpush2.msra.mxu0 0.0
    %163 = vmatprep.subr.mxu0 0.0
    %164 = vmatpush2.msra.mxu0 0.0
    %165 = vmatprep.subr.mxu0 0.0
    %166 = vmatpush2.msra.mxu0 0.0
    %167 = vmatprep.subr.mxu0 0.0
    %168 = vmatpush2.msra.mxu0 0.0
    %169 = vmatprep.subr.mxu0 0.0
    %170 = vmatpush2.msra.mxu0 0.0
    %171 = vmatprep.subr.mxu0 0.0
    %172 = vmatpush2.msra.mxu0 0.0
    %173 = vmatprep.mubr.f32.mxu0 0.0
    %174 = vmatmul.mubr.f32.gmra.mxu0 %v85
    %v175 = vpop.f32.mrf.mxu0
    %v176 = vadd.f32 %v107, %v175
    %v177 = vpop.f32.mrf.mxu0
    %178 = vdwg.mxu0
    %v179 = vmax.f32 %v176, 0.0
    %v180 = vld [vmem:[#allocation2 + $0x8] sm:$0xff]
    %v181 = vld [vmem:[#allocation2 + $0x28] sm:$0xff]
    %v182 = vld [vmem:[#allocation2 + $0x48] sm:$0xff]
    %v183 = vld [vmem:[#allocation2 + $0x68] sm:$0xff]
    %v184 = vld [vmem:[#allocation2 + $0x88] sm:$0xff]
    %v185 = vld [vmem:[#allocation2 + $0xa8] sm:$0xff]
    %v186 = vld [vmem:[#allocation2 + $0xc8] sm:$0xff]
    %v187 = vld [vmem:[#allocation2 + $0xe8] sm:$0xff]
    %v188 = vld [vmem:[#allocation2 + $0x108] sm:$0xff]
    %v189 = vld [vmem:[#allocation2 + $0x128] sm:$0xff]
    %v190 = vld [vmem:[#allocation2 + $0x148] sm:$0xff]
    %v191 = vld [vmem:[#allocation2 + $0x168] sm:$0xff]
    %v192 = vld [vmem:[#allocation2 + $0x188] sm:$0xff]
    %v193 = vld [vmem:[#allocation2 + $0x1a8] sm:$0xff]
    %v194 = vld [vmem:[#allocation2 + $0x1c8] sm:$0xff]
    %v195 = vld [vmem:[#allocation2 + $0x1e8] sm:$0xff]
    %v196 = vld [vmem:[%s3 + $0x2] sm:$0x1]
    %v198 = vlaneseq
    %v199 = vshrl.u32 %v198, 7
    %v200 = vsub.s32 0, %v199
    %v201 = vrot.slane %v196, %v200
    %203 = vmatprep.subr.mxu0 0.0
    %204 = vmatpush1.msra.mxu0 %v195
    %205 = vmatprep.subr.mxu0 0.0
    %206 = vmatpush1.msra.mxu0 %v194
    %207 = vmatprep.subr.mxu0 0.0
    %208 = vmatpush1.msra.mxu0 %v193
    %209 = vmatprep.subr.mxu0 0.0
    %210 = vmatpush1.msra.mxu0 %v192
    %211 = vmatprep.subr.mxu0 0.0
    %212 = vmatpush1.msra.mxu0 %v191
    %213 = vmatprep.subr.mxu0 0.0
    %214 = vmatpush1.msra.mxu0 %v190
    %215 = vmatprep.subr.mxu0 0.0
    %216 = vmatpush1.msra.mxu0 %v189
    %217 = vmatprep.subr.mxu0 0.0
    %218 = vmatpush1.msra.mxu0 %v188
    %219 = vmatprep.subr.mxu0 0.0
    %220 = vmatpush1.msra.mxu0 %v187
    %221 = vmatprep.subr.mxu0 0.0
    %222 = vmatpush1.msra.mxu0 %v186
    %223 = vmatprep.subr.mxu0 0.0
    %224 = vmatpush1.msra.mxu0 %v185
    %225 = vmatprep.subr.mxu0 0.0
    %226 = vmatpush1.msra.mxu0 %v184
    %227 = vmatprep.subr.mxu0 0.0
    %228 = vmatpush1.msra.mxu0 %v183
    %229 = vmatprep.subr.mxu0 0.0
    %230 = vmatpush1.msra.mxu0 %v182
    %231 = vmatprep.subr.mxu0 0.0
    %232 = vmatpush1.msra.mxu0 %v181
    %233 = vmatprep.subr.mxu0 0.0
    %234 = vmatpush1.msra.mxu0 %v180
    %235 = vmatprep.subr.mxu0 0.0
    %236 = vmatpush2.msra.mxu0 0.0
    %237 = vmatprep.subr.mxu0 0.0
    %238 = vmatpush2.msra.mxu0 0.0
    %239 = vmatprep.subr.mxu0 0.0
    %240 = vmatpush2.msra.mxu0 0.0
    %241 = vmatprep.subr.mxu0 0.0
    %242 = vmatpush2.msra.mxu0 0.0
    %243 = vmatprep.subr.mxu0 0.0
    %244 = vmatpush2.msra.mxu0 0.0
    %245 = vmatprep.subr.mxu0 0.0
    %246 = vmatpush2.msra.mxu0 0.0
    %247 = vmatprep.subr.mxu0 0.0
    %248 = vmatpush2.msra.mxu0 0.0
    %249 = vmatprep.subr.mxu0 0.0
    %250 = vmatpush2.msra.mxu0 0.0
    %251 = vmatprep.subr.mxu0 0.0
    %252 = vmatpush2.msra.mxu0 0.0
    %253 = vmatprep.subr.mxu0 0.0
    %254 = vmatpush2.msra.mxu0 0.0
    %255 = vmatprep.subr.mxu0 0.0
    %256 = vmatpush2.msra.mxu0 0.0
    %257 = vmatprep.subr.mxu0 0.0
    %258 = vmatpush2.msra.mxu0 0.0
    %259 = vmatprep.subr.mxu0 0.0
    %260 = vmatpush2.msra.mxu0 0.0
    %261 = vmatprep.subr.mxu0 0.0
    %262 = vmatpush2.msra.mxu0 0.0
    %263 = vmatprep.subr.mxu0 0.0
    %264 = vmatpush2.msra.mxu0 0.0
    %265 = vmatprep.subr.mxu0 0.0
    %266 = vmatpush2.msra.mxu0 0.0
    %267 = vmatprep.mubr.f32.mxu0 0.0
    %268 = vmatmul.mubr.f32.gmra.mxu0 %v179
    %v269 = vpop.f32.mrf.mxu0
    %v270 = vadd.f32 %v201, %v269
    %v271 = vpop.f32.mrf.mxu0
    %272 = vdwg.mxu0
    %v273 = vmax.f32 %v270, 0.0
    %v274 = vld [vmem:[#allocation2 + $0x10] sm:$0xff]
    %v275 = vld [vmem:[#allocation2 + $0x30] sm:$0xff]
    %v276 = vld [vmem:[#allocation2 + $0x50] sm:$0xff]
    %v277 = vld [vmem:[#allocation2 + $0x70] sm:$0xff]
    %v278 = vld [vmem:[#allocation2 + $0x90] sm:$0xff]
    %v279 = vld [vmem:[#allocation2 + $0xb0] sm:$0xff]
    %v280 = vld [vmem:[#allocation2 + $0xd0] sm:$0xff]
    %v281 = vld [vmem:[#allocation2 + $0xf0] sm:$0xff]
    %v282 = vld [vmem:[#allocation2 + $0x110] sm:$0xff]
    %v283 = vld [vmem:[#allocation2 + $0x130] sm:$0xff]
    %v284 = vld [vmem:[#allocation2 + $0x150] sm:$0xff]
    %v285 = vld [vmem:[#allocation2 + $0x170] sm:$0xff]
    %v286 = vld [vmem:[#allocation2 + $0x190] sm:$0xff]
    %v287 = vld [vmem:[#allocation2 + $0x1b0] sm:$0xff]
    %v288 = vld [vmem:[#allocation2 + $0x1d0] sm:$0xff]
    %v289 = vld [vmem:[#allocation2 + $0x1f0] sm:$0xff]
    %v290 = vld [vmem:[%s3 + $0x3] sm:$0x1]
    %v292 = vlaneseq
    %v293 = vshrl.u32 %v292, 7
    %v294 = vsub.s32 0, %v293
    %v295 = vrot.slane %v290, %v294
    %297 = vmatprep.subr.mxu0 0.0
    %298 = vmatpush1.msra.mxu0 %v289
    %299 = vmatprep.subr.mxu0 0.0
    %300 = vmatpush1.msra.mxu0 %v288
    %301 = vmatprep.subr.mxu0 0.0
    %302 = vmatpush1.msra.mxu0 %v287
    %303 = vmatprep.subr.mxu0 0.0
    %304 = vmatpush1.msra.mxu0 %v286
    %305 = vmatprep.subr.mxu0 0.0
    %306 = vmatpush1.msra.mxu0 %v285
    %307 = vmatprep.subr.mxu0 0.0
    %308 = vmatpush1.msra.mxu0 %v284
    %309 = vmatprep.subr.mxu0 0.0
    %310 = vmatpush1.msra.mxu0 %v283
    %311 = vmatprep.subr.mxu0 0.0
    %312 = vmatpush1.msra.mxu0 %v282
    %313 = vmatprep.subr.mxu0 0.0
    %314 = vmatpush1.msra.mxu0 %v281
    %315 = vmatprep.subr.mxu0 0.0
    %316 = vmatpush1.msra.mxu0 %v280
    %317 = vmatprep.subr.mxu0 0.0
    %318 = vmatpush1.msra.mxu0 %v279
    %319 = vmatprep.subr.mxu0 0.0
    %320 = vmatpush1.msra.mxu0 %v278
    %321 = vmatprep.subr.mxu0 0.0
    %322 = vmatpush1.msra.mxu0 %v277
    %323 = vmatprep.subr.mxu0 0.0
    %324 = vmatpush1.msra.mxu0 %v276
    %325 = vmatprep.subr.mxu0 0.0
    %326 = vmatpush1.msra.mxu0 %v275
    %327 = vmatprep.subr.mxu0 0.0
    %328 = vmatpush1.msra.mxu0 %v274
    %329 = vmatprep.subr.mxu0 0.0
    %330 = vmatpush2.msra.mxu0 0.0
    %331 = vmatprep.subr.mxu0 0.0
    %332 = vmatpush2.msra.mxu0 0.0
    %333 = vmatprep.subr.mxu0 0.0
    %334 = vmatpush2.msra.mxu0 0.0
    %335 = vmatprep.subr.mxu0 0.0
    %336 = vmatpush2.msra.mxu0 0.0
    %337 = vmatprep.subr.mxu0 0.0
    %338 = vmatpush2.msra.mxu0 0.0
    %339 = vmatprep.subr.mxu0 0.0
    %340 = vmatpush2.msra.mxu0 0.0
    %341 = vmatprep.subr.mxu0 0.0
    %342 = vmatpush2.msra.mxu0 0.0
    %343 = vmatprep.subr.mxu0 0.0
    %344 = vmatpush2.msra.mxu0 0.0
    %345 = vmatprep.subr.mxu0 0.0
    %346 = vmatpush2.msra.mxu0 0.0
    %347 = vmatprep.subr.mxu0 0.0
    %348 = vmatpush2.msra.mxu0 0.0
    %349 = vmatprep.subr.mxu0 0.0
    %350 = vmatpush2.msra.mxu0 0.0
    %351 = vmatprep.subr.mxu0 0.0
    %352 = vmatpush2.msra.mxu0 0.0
    %353 = vmatprep.subr.mxu0 0.0
    %354 = vmatpush2.msra.mxu0 0.0
    %355 = vmatprep.subr.mxu0 0.0
    %356 = vmatpush2.msra.mxu0 0.0
    %357 = vmatprep.subr.mxu0 0.0
    %358 = vmatpush2.msra.mxu0 0.0
    %359 = vmatprep.subr.mxu0 0.0
    %360 = vmatpush2.msra.mxu0 0.0
    %361 = vmatprep.mubr.f32.mxu0 0.0
    %362 = vmatmul.mubr.f32.gmra.mxu0 %v273
    %v363 = vpop.f32.mrf.mxu0
    %v364 = vadd.f32 %v295, %v363
    %v365 = vpop.f32.mrf.mxu0
    %366 = vdwg.mxu0
    %v367 = vmax.f32 %v364, 0.0
    %v368 = vld [vmem:[#allocation2 + $0x18] sm:$0xff]
    %v369 = vld [vmem:[#allocation2 + $0x38] sm:$0xff]
    %v370 = vld [vmem:[#allocation2 + $0x58] sm:$0xff]
    %v371 = vld [vmem:[#allocation2 + $0x78] sm:$0xff]
    %v372 = vld [vmem:[#allocation2 + $0x98] sm:$0xff]
    %v373 = vld [vmem:[#allocation2 + $0xb8] sm:$0xff]
    %v374 = vld [vmem:[#allocation2 + $0xd8] sm:$0xff]
    %v375 = vld [vmem:[#allocation2 + $0xf8] sm:$0xff]
    %v376 = vld [vmem:[#allocation2 + $0x118] sm:$0xff]
    %v377 = vld [vmem:[#allocation2 + $0x138] sm:$0xff]
    %v378 = vld [vmem:[#allocation2 + $0x158] sm:$0xff]
    %v379 = vld [vmem:[#allocation2 + $0x178] sm:$0xff]
    %v380 = vld [vmem:[#allocation2 + $0x198] sm:$0xff]
    %v381 = vld [vmem:[#allocation2 + $0x1b8] sm:$0xff]
    %v382 = vld [vmem:[#allocation2 + $0x1d8] sm:$0xff]
    %v383 = vld [vmem:[#allocation2 + $0x1f8] sm:$0xff]
    %v384 = vld [vmem:[%s3 + $0x4] sm:$0x1]
    %v386 = vlaneseq
    %v387 = vshrl.u32 %v386, 7
    %v388 = vsub.s32 0, %v387
    %v389 = vrot.slane %v384, %v388
    %391 = vmatprep.subr.mxu0 0.0
    %392 = vmatpush1.msra.mxu0 %v383
    %393 = vmatprep.subr.mxu0 0.0
    %394 = vmatpush1.msra.mxu0 %v382
    %395 = vmatprep.subr.mxu0 0.0
    %396 = vmatpush1.msra.mxu0 %v381
    %397 = vmatprep.subr.mxu0 0.0
    %398 = vmatpush1.msra.mxu0 %v380
    %399 = vmatprep.subr.mxu0 0.0
    %400 = vmatpush1.msra.mxu0 %v379
    %401 = vmatprep.subr.mxu0 0.0
    %402 = vmatpush1.msra.mxu0 %v378
    %403 = vmatprep.subr.mxu0 0.0
    %404 = vmatpush1.msra.mxu0 %v377
    %405 = vmatprep.subr.mxu0 0.0
    %406 = vmatpush1.msra.mxu0 %v376
    %407 = vmatprep.subr.mxu0 0.0
    %408 = vmatpush1.msra.mxu0 %v375
    %409 = vmatprep.subr.mxu0 0.0
    %410 = vmatpush1.msra.mxu0 %v374
    %411 = vmatprep.subr.mxu0 0.0
    %412 = vmatpush1.msra.mxu0 %v373
    %413 = vmatprep.subr.mxu0 0.0
    %414 = vmatpush1.msra.mxu0 %v372
    %415 = vmatprep.subr.mxu0 0.0
    %416 = vmatpush1.msra.mxu0 %v371
    %417 = vmatprep.subr.mxu0 0.0
    %418 = vmatpush1.msra.mxu0 %v370
    %419 = vmatprep.subr.mxu0 0.0
    %420 = vmatpush1.msra.mxu0 %v369
    %421 = vmatprep.subr.mxu0 0.0
    %422 = vmatpush1.msra.mxu0 %v368
    %423 = vmatprep.subr.mxu0 0.0
    %424 = vmatpush2.msra.mxu0 0.0
    %425 = vmatprep.subr.mxu0 0.0
    %426 = vmatpush2.msra.mxu0 0.0
    %427 = vmatprep.subr.mxu0 0.0
    %428 = vmatpush2.msra.mxu0 0.0
    %429 = vmatprep.subr.mxu0 0.0
    %430 = vmatpush2.msra.mxu0 0.0
    %431 = vmatprep.subr.mxu0 0.0
    %432 = vmatpush2.msra.mxu0 0.0
    %433 = vmatprep.subr.mxu0 0.0
    %434 = vmatpush2.msra.mxu0 0.0
    %435 = vmatprep.subr.mxu0 0.0
    %436 = vmatpush2.msra.mxu0 0.0
    %437 = vmatprep.subr.mxu0 0.0
    %438 = vmatpush2.msra.mxu0 0.0
    %439 = vmatprep.subr.mxu0 0.0
    %440 = vmatpush2.msra.mxu0 0.0
    %441 = vmatprep.subr.mxu0 0.0
    %442 = vmatpush2.msra.mxu0 0.0
    %443 = vmatprep.subr.mxu0 0.0
    %444 = vmatpush2.msra.mxu0 0.0
    %445 = vmatprep.subr.mxu0 0.0
    %446 = vmatpush2.msra.mxu0 0.0
    %447 = vmatprep.subr.mxu0 0.0
    %448 = vmatpush2.msra.mxu0 0.0
    %449 = vmatprep.subr.mxu0 0.0
    %450 = vmatpush2.msra.mxu0 0.0
    %451 = vmatprep.subr.mxu0 0.0
    %452 = vmatpush2.msra.mxu0 0.0
    %453 = vmatprep.subr.mxu0 0.0
    %454 = vmatpush2.msra.mxu0 0.0
    %455 = vmatprep.mubr.f32.mxu0 0.0
    %456 = vmatmul.mubr.f32.gmra.mxu0 %v367
    %v457 = vpop.f32.mrf.mxu0
    %v458 = vadd.f32 %v389, %v457
    %v459 = vpop.f32.mrf.mxu0
    %460 = vdwg.mxu0
    %vm461 = vcmask 64512
    %462 = vst.msk [vmem:[#allocation5] sm:$0xff] %vm461, %v458
    // Predicated region
    $region22: #{tpu_custom_call.1} parent=1 // pred_check
      _
    $region23: #{tpu_custom_call.1} parent=1 // pred_check_branch
      %464 = sbr.rel (0) target = $region25
    $region24: #{tpu_custom_call.1} parent=1 // pred_region
      %s466 = ssub.s32 128, 128
      %467 = vsyncadd [#allocation4], %s466
      %s469 = sshll.u32 [#allocation5], 4
      %s470 = int_to_ptr.vmem [resolvable:$true] %s469
      %472 = dma.vmem_to_hbm [thread:$0]  %s470, 128, %s4, [#allocation4]
    $region25: #{tpu_custom_call.1} parent=1 // pred_fallthru
      _
    // Predicated region
    $region26: #{tpu_custom_call.1} parent=1 // pred_check
      _
    $region27: #{tpu_custom_call.1} parent=1 // pred_check_branch
      %474 = sbr.rel (0) target = $region29
    $region28: #{tpu_custom_call.1} parent=1 // pred_region
      %475 = dma.done [#allocation4], 128
    $region29: #{tpu_custom_call.1} parent=1 // pred_fallthru
      _
    %476 = vsyncpa [#allocation3], 1
    %477 = vsyncpa [#allocation4], 1

</llo_original>
